<compile_context>
chip_gen: v7x
topology: tpu7x:2x2x1
jax: 0.10.0
libtpu: 0.0.40
codegen_flags: <defaults>
</compile_context>

<pallas_src>
import functools
import numpy as np

import jax
import jax.numpy as jnp
from jax import lax
from jax.experimental import pallas as pl
from jax.experimental.pallas import tpu as pltpu

H = 16
W = 16
N = H * W  # 256 lanes, lane-dense


# ----------------------------------------------------------------------------
# pltpu.roll convention probe (np.roll convention expected; detect to be safe).
# ----------------------------------------------------------------------------
def _detect_roll_sign():
    def kernel(x_ref, o_ref):
        o_ref[...] = pltpu.roll(x_ref[...], 1, axis=1)

    x = jnp.arange(8 * 128, dtype=jnp.float32).reshape(8, 128)
    out = pl.pallas_call(
        kernel, out_shape=jax.ShapeDtypeStruct((8, 128), jnp.float32))(x)
    out = np.asarray(jax.block_until_ready(out))
    xn = np.arange(8 * 128, dtype=np.float32).reshape(8, 128)
    if np.array_equal(out, np.roll(xn, 1, axis=1)):
        return -1   # result[p] = x[p - shift]  ->  to read x[p + d] use shift = -d
    if np.array_equal(out, np.roll(xn, -1, axis=1)):
        return 1    # result[p] = x[p + shift]  ->  to read x[p + d] use shift = +d
    raise RuntimeError("unexpected pltpu.roll semantics")


def _lane_shift(arr, delta, roll_sign):
    """result[:, p] = arr[:, (p + delta) % n]  (caller masks wrapped positions)."""
    n = arr.shape[-1]
    s = (roll_sign * delta) % n
    if s == 0:
        return arr
    return pltpu.roll(arr, s, axis=1)


# ----------------------------------------------------------------------------
# Static tap offsets / masks / projection matrices (numpy, baked as constants)
# ----------------------------------------------------------------------------
def _offsets(ksize, dilation):
    c = (ksize - 1) // 2
    return [((ky - c) * dilation, (kx - c) * dilation)
            for ky in range(ksize) for kx in range(ksize)]


BLOCK_OFFSETS = [off for d in (2, 3, 4) for off in _offsets(3, d)]       # 27 taps
SFCN_OFFSETS = [_offsets(7, 1), _offsets(7, 1), _offsets(7, 2)]          # 49 taps each


def _tap_masks(offsets):
    p = np.arange(N)
    x, y = p % W, p // W
    ms = []
    for dy, dx in offsets:
        m = (((x + dx) >= 0) & ((x + dx) < W) &
             ((y + dy) >= 0) & ((y + dy) < H)).astype(np.float32)
        ms.append(m.reshape(1, N))
    return np.stack(ms, axis=0)                                          # (T, 1, N)


def _chain_consts(row_column):
    """Per-block validity masks and factored projection matrices (5 blocks)."""
    p = np.arange(N)
    x, y = p % W, p // W
    valid, Rs, Bs = [], [], []
    for k in range(5):
        shrink = min(k + 1, 3)             # blocks 1..3 pool, 4..5 keep size
        if row_column == 0:                # row blocks: pool / project along W
            wv = W - shrink
            v = (x < wv)
            R = np.zeros((N, H), np.float32)
            R[p, y] = v / float(wv)
            Bc = np.zeros((H, N), np.float32)
            Bc[y, p] = v
        else:                              # column blocks: pool / project along H
            hv = H - shrink
            v = (y < hv)
            R = np.zeros((N, W), np.float32)
            R[p, x] = v / float(hv)
            Bc = np.zeros((W, N), np.float32)
            Bc[x, p] = v
        valid.append(v.astype(np.float32).reshape(1, N))
        Rs.append(R)
        Bs.append(Bc)
    return np.stack(valid, 0), np.stack(Rs, 0), np.stack(Bs, 0)          # (5,1,N),(5,N,16),(5,16,N)


# ----------------------------------------------------------------------------
# Kernel 1: fused SFCN (3x [7x7 dilated conv + ReLU]), per-sample grid step.
# ----------------------------------------------------------------------------
def _make_sfcn_kernel(roll_sign):
    def kernel(x_ref, w_ref, b_ref, m1_ref, m2_ref, o_ref):
        act = x_ref[...]                                   # (18, N), channels 3..17 are zero
        for ci in range(3):
            offs = SFCN_OFFSETS[ci]
            m_ref = m2_ref if ci == 2 else m1_ref
            acc = jnp.zeros((18, N), jnp.float32)
            for t, (dy, dx) in enumerate(offs):
                tap = _lane_shift(act, dy * W + dx, roll_sign)
                contrib = jnp.dot(w_ref[ci * 49 + t], tap,
                                  preferred_element_type=jnp.float32)
                acc = acc + contrib * m_ref[t]
            act = jnp.maximum(acc + b_ref[ci], 0.0)
        o_ref[...] = act
    return kernel


def _sfcn_call(B, roll_sign):
    return pl.pallas_call(
        _make_sfcn_kernel(roll_sign),
        out_shape=jax.ShapeDtypeStruct((B, 18, N), jnp.float32),
        grid=(B,),
        in_specs=[
            pl.BlockSpec((None, 18, N), lambda b: (b, 0, 0)),
            pl.BlockSpec((147, 18, 18), lambda b: (0, 0, 0)),
            pl.BlockSpec((3, 18, 1), lambda b: (0, 0, 0)),
            pl.BlockSpec((49, 1, N), lambda b: (0, 0, 0)),
            pl.BlockSpec((49, 1, N), lambda b: (0, 0, 0)),
        ],
        out_specs=pl.BlockSpec((None, 18, N), lambda b: (b, 0, 0)),
        compiler_params=pltpu.CompilerParams(dimension_semantics=("parallel",)),
    )


# ----------------------------------------------------------------------------
# Kernel 2: fully fused 5-Block chain (row or column), per-sample grid step.
#   Activation (37, N) is carried across the 5 blocks in VMEM/vregs; dead
#   (pooled-away) rows/columns are kept as zeroed lanes.
# ----------------------------------------------------------------------------
def _make_chain_kernel(row_column, roll_sign):
    pool_delta = 1 if row_column == 0 else W

    def kernel(x_ref, wc_ref, bc_ref, wbr_ref, bbr_ref,
               tm_ref, vm_ref, pr_ref, pb_ref, probs_ref):
        act = jnp.concatenate(
            [x_ref[...], jnp.zeros((19, N), jnp.float32)], axis=0)       # (37, N)
        probs = []
        for k in range(5):
            # three dilated 3x3 convs as 27 accumulated tap matmuls
            acc = jnp.zeros((18, N), jnp.float32)
            for t, (dy, dx) in enumerate(BLOCK_OFFSETS):
                tap = _lane_shift(act, dy * W + dx, roll_sign)
                contrib = jnp.dot(wc_ref[k * 27 + t], tap,
                                  preferred_element_type=jnp.float32)
                acc = acc + contrib * tm_ref[t]
            out1 = acc + bc_ref[k]                                       # (18, N)
            if k < 3:    # blocks 1..3: stride-1 (1,2)/(2,1) max pool via roll
                out1 = jnp.maximum(out1, _lane_shift(out1, pool_delta, roll_sign))
            vmask = vm_ref[k]                                            # (1, N)
            out1 = out1 * vmask                                          # zero dead lanes
            # fused branch1/branch2 1x1 convs
            br = jnp.dot(wbr_ref[k], out1,
                         preferred_element_type=jnp.float32) + bbr_ref[k]   # (19, N)
            # projection pooling (factored reduce + broadcast, masks dead lanes)
            means = jnp.dot(br, pr_ref[k], preferred_element_type=jnp.float32)   # (19, 16)
            proj = jnp.dot(means, pb_ref[k], preferred_element_type=jnp.float32)  # (19, N)
            prob = jax.nn.sigmoid(proj[18:19, :]) * vmask                # (1, N)
            probs.append(prob)
            act = jnp.concatenate([proj[0:18, :], out1, prob], axis=0)   # (37, N)
        probs_ref[...] = jnp.concatenate(probs, axis=0)                  # (5, N)
    return kernel


def _chain_call(B, row_column, roll_sign):
    return pl.pallas_call(
        _make_chain_kernel(row_column, roll_sign),
        out_shape=jax.ShapeDtypeStruct((B, 5, N), jnp.float32),
        grid=(B,),
        in_specs=[
            pl.BlockSpec((None, 18, N), lambda b: (b, 0, 0)),
            pl.BlockSpec((135, 18, 37), lambda b: (0, 0, 0)),
            pl.BlockSpec((5, 18, 1), lambda b: (0, 0, 0)),
            pl.BlockSpec((5, 19, 18), lambda b: (0, 0, 0)),
            pl.BlockSpec((5, 19, 1), lambda b: (0, 0, 0)),
            pl.BlockSpec((27, 1, N), lambda b: (0, 0, 0)),
            pl.BlockSpec((5, 1, N), lambda b: (0, 0, 0)),
            pl.BlockSpec((5, N, 16), lambda b: (0, 0, 0)),
            pl.BlockSpec((5, 16, N), lambda b: (0, 0, 0)),
        ],
        out_specs=pl.BlockSpec((None, 5, N), lambda b: (b, 0, 0)),
        compiler_params=pltpu.CompilerParams(dimension_semantics=("parallel",)),
    )


# ----------------------------------------------------------------------------
# Weight packing (tiny XLA glue, fused under the jit)
# ----------------------------------------------------------------------------
def _pack_sfcn_weights(sfcn):
    taps, biases = [], []
    for (w, b) in sfcn:                                     # (18, Cin, 7, 7)
        cin = w.shape[1]
        wp = jnp.pad(w, ((0, 0), (0, 18 - cin), (0, 0), (0, 0)))
        taps.append(jnp.transpose(wp, (2, 3, 0, 1)).reshape(49, 18, 18))
        biases.append(b.reshape(18, 1))
    return jnp.concatenate(taps, axis=0), jnp.stack(biases, axis=0)      # (147,18,18),(3,18,1)


def _pack_block_weights(blocks):
    wconv, bconv, wbr, bbr = [], [], [], []
    for p in blocks:
        taps = []
        for ci, name in enumerate(("conv1", "conv2", "conv3")):
            w = p[name][0]                                  # (6, Cin, 3, 3)
            cin = w.shape[1]
            wp = jnp.pad(w, ((6 * ci, 12 - 6 * ci), (0, 37 - cin), (0, 0), (0, 0)))
            taps.append(jnp.transpose(wp, (2, 3, 0, 1)).reshape(9, 18, 37))
        wconv.append(jnp.concatenate(taps, axis=0))          # (27, 18, 37)
        bconv.append(jnp.concatenate(
            [p["conv1"][1], p["conv2"][1], p["conv3"][1]]).reshape(18, 1))
        wbr.append(jnp.concatenate([p["branch1"][0].reshape(18, 18),
                                    p["branch2"][0].reshape(1, 18)], axis=0))
        bbr.append(jnp.concatenate([p["branch1"][1], p["branch2"][1]]).reshape(19, 1))
    return (jnp.concatenate(wconv, axis=0), jnp.stack(bconv, axis=0),
            jnp.stack(wbr, axis=0), jnp.stack(bbr, axis=0))


# ----------------------------------------------------------------------------
# Whole-model forward (mirrors Split.forward), single jit
# ----------------------------------------------------------------------------
def split_forward(params, x_nhwc, *, roll_sign):
    B = x_nhwc.shape[0]
    x = jnp.transpose(x_nhwc, (0, 3, 1, 2)).reshape(B, 3, N)
    x = jnp.pad(x, ((0, 0), (0, 15), (0, 0)))                # (B, 18, N), extra channels zero

    sw, sb = _pack_sfcn_weights(params["sfcn"])
    m1 = jnp.asarray(_tap_masks(SFCN_OFFSETS[0]))
    m2 = jnp.asarray(_tap_masks(SFCN_OFFSETS[2]))
    feat = _sfcn_call(B, roll_sign)(x, sw, sb, m1, m2)        # (B, 18, N)

    tapm = jnp.asarray(_tap_masks(BLOCK_OFFSETS))
    chain_probs = []
    for rc, key in ((0, "rows"), (1, "cols")):
        wc, bc, wbr, bbr = _pack_block_weights(params[key])
        vm_np, pr_np, pb_np = _chain_consts(rc)
        probs = _chain_call(B, rc, roll_sign)(
            feat, wc, bc, wbr, bbr, tapm,
            jnp.asarray(vm_np), jnp.asarray(pr_np), jnp.asarray(pb_np))
        chain_probs.append(probs)                             # (B, 5, N)
    probs_r, probs_c = chain_probs

    rp = [probs_r[:, k, 0::W] for k in (2, 3, 4)]             # (B, H): column 0 of each row
    cp = [probs_c[:, k, 0:W] for k in (2, 3, 4)]              # (B, W): row 0
    return tuple(rp + cp)


# ----------------------------------------------------------------------------
# Parameter init (deterministic, PyTorch-Conv2d-style uniform init)
# ----------------------------------------------------------------------------
def init_conv(key, cout, cin, k):
    wk, bk = jax.random.split(key)
    bound = 1.0 / float(np.sqrt(cin * k * k))
    w = jax.random.uniform(wk, (cout, cin, k, k), jnp.float32, -bound, bound)
    b = jax.random.uniform(bk, (cout,), jnp.float32, -bound, bound)
    return w, b


def init_block_params(key, in_channels):
    ks = jax.random.split(key, 5)
    return dict(
        conv1=init_conv(ks[0], 6, in_channels, 3),
        conv2=init_conv(ks[1], 6, in_channels, 3),
        conv3=init_conv(ks[2], 6, in_channels, 3),
        branch1=init_conv(ks[3], 18, 18, 1),
        branch2=init_conv(ks[4], 1, 18, 1),
    )


def init_split_params(key):
    ks = jax.random.split(key, 13)
    sfcn = [init_conv(ks[0], 18, 3, 7),
            init_conv(ks[1], 18, 18, 7),
            init_conv(ks[2], 18, 18, 7)]
    rows = [init_block_params(ks[3 + i], 18 if i == 0 else 37) for i in range(5)]
    cols = [init_block_params(ks[8 + i], 18 if i == 0 else 37) for i in range(5)]
    return dict(sfcn=sfcn, rows=rows, cols=cols)


# ----------------------------------------------------------------------------
# Pure-JAX reference (mirrors the PyTorch module) for correctness checking
# ----------------------------------------------------------------------------
def _conv2d_ref(x, w, b, padding, dilation):
    out = lax.conv_general_dilated(
        x, w, window_strides=(1, 1),
        padding=((padding, padding), (padding, padding)),
        rhs_dilation=(dilation, dilation),
        dimension_numbers=("NCHW", "OIHW", "NCHW"),
        precision=lax.Precision.HIGHEST)
    return out + b.reshape(1, -1, 1, 1)


def _block_ref(p, x, index, row_column):
    out1 = jnp.concatenate([_conv2d_ref(x, *p["conv1"], 2, 2),
                            _conv2d_ref(x, *p["conv2"], 3, 3),
                            _conv2d_ref(x, *p["conv3"], 4, 4)], axis=1)
    if index <= 3:
        if row_column == 0:
            out1 = jnp.maximum(out1[:, :, :, :-1], out1[:, :, :, 1:])
        else:
            out1 = jnp.maximum(out1[:, :, :-1, :], out1[:, :, 1:, :])
    b1 = _conv2d_ref(out1, *p["branch1"], 0, 1)
    b2 = _conv2d_ref(out1, *p["branch2"], 0, 1)
    ax = 3 if row_column == 0 else 2
    b1 = jnp.broadcast_to(b1.mean(axis=ax, keepdims=True), b1.shape)
    b2 = jnp.broadcast_to(b2.mean(axis=ax, keepdims=True), b2.shape)
    b2 = jax.nn.sigmoid(b2)
    return jnp.concatenate([b1, out1, b2], axis=1), b2


def split_forward_ref(params, x_nhwc):
    x = jnp.transpose(x_nhwc, (0, 3, 1, 2))
    out = x
    for (w, b), pad, dil in zip(params["sfcn"], (3, 3, 6), (1, 1, 2)):
        out = jnp.maximum(_conv2d_ref(out, w, b, pad, dil), 0.0)
    r = c = out
    rps, cps = [], []
    for i in range(5):
        r, rp = _block_ref(params["rows"][i], r, i + 1, 0)
        rps.append(rp)
    for i in range(5):
        c, cp = _block_ref(params["cols"][i], c, i + 1, 1)
        cps.append(cp)
    return (rps[2][:, 0, :, 0], rps[3][:, 0, :, 0], rps[4][:, 0, :, 0],
            cps[2][:, 0, 0, :], cps[3][:, 0, 0, :], cps[4][:, 0, 0, :])


if __name__ == "__main__":
    roll_sign = _detect_roll_sign()

    key = jax.random.PRNGKey(0)
    pkey, xkey = jax.random.split(key)
    params = init_split_params(pkey)
    # NHWC input, as the PyTorch module expects (it permutes to NCHW internally)
    x = jax.random.normal(xkey, (2, 16, 16, 3), jnp.float32)

    fwd = jax.jit(functools.partial(split_forward, roll_sign=roll_sign))
    outs = jax.block_until_ready(fwd(params, x))

    # shapes: rp3/4/5 -> (B, H), cp3/4/5 -> (B, W)
    for o in outs:
        assert o.shape == (2, 16)
        assert bool(jnp.isfinite(o).all())

    # numerical check against a pure-JAX reference of the PyTorch module
    ref = jax.block_until_ready(jax.jit(split_forward_ref)(params, x))
    for o, r in zip(outs, ref):
        np.testing.assert_allclose(np.asarray(o), np.asarray(r), atol=1e-2, rtol=0.0)

    print("KERNEL_OK")
</pallas_src>

<mosaic_0001>
module attributes {stable_mosaic.version = 11 : i64} {
  func.func @kernel(%arg0: memref<8x128xf32, #tpu.memory_space<vmem>>, %arg1: memref<8x128xf32, #tpu.memory_space<vmem>>) attributes {dimension_semantics = [], scalar_prefetch = 0 : i64, scratch_operands = 0 : i64, tpu.core_type = #tpu.core_type<tc>} {
    %c0 = arith.constant 0 : index
    %c0_0 = arith.constant 0 : index
    %0 = vector.load %arg0[%c0, %c0_0] : memref<8x128xf32, #tpu.memory_space<vmem>>, vector<8x128xf32>
    %c1_i32 = arith.constant 1 : i32
    %1 = tpu.dynamic_rotate %0 by %c1_i32 dim 1 : vector<8x128xf32>, i32 -> vector<8x128xf32>
    %c0_1 = arith.constant 0 : index
    %c0_2 = arith.constant 0 : index
    %2 = vector.load %arg1[%c0_1, %c0_2] : memref<8x128xf32, #tpu.memory_space<vmem>>, vector<8x128xf32>
    tpu.vector_store %arg1[%c0_1, %c0_2], %1 {strides = array<i32>} : memref<8x128xf32, #tpu.memory_space<vmem>>, vector<8x128xf32>,
    return
  }
}

</mosaic_0001>

<llo_original>
// kernel: tpu_custom_call.1
$region0: #{tpu_custom_call.1}
  #allocation0 [shape = 'u32[]', space=smem, size = 0x4, offset = 0x4, fixed_abs, tag = 'smem constant byte address 0x4 - core index']
  #allocation1 [shape = 'u32[144,128]{1,0:T(1,128)}', space=vmem, size = 0x12000, scoped, tag = 'internal scratch']
  %s0 = inlined_call_operand.hbm [shape: f32[8,128], index: 0, kind: input, shape index: {}]
  %s1 = inlined_call_operand.hbm [shape: f32[8,128], index: 1, kind: output, shape index: {}]
  %s2 = sld [smem:[#allocation0]]
  $region18: #{tpu_custom_call.1} parent=0
    _
  %s4 = ssub.s32 1, %s2
  %s5 = scalar_select 0, %s4, %s2
  $region1: #{tpu_custom_call.1} parent=0
    #allocation2 [shape = 'u8[4096]{0}', space=vmem, size = 0x1000, scoped, tag = 'input window, operand 0, single buffered']
    #allocation3 [shape = 's32[1]{0}', space=sflag, size = 0x4, scoped, tag = 'scoped memory for tpu_custom_call.1']
    #allocation4 [shape = 's32[1]{0}', space=sflag, size = 0x4, scoped, tag = 'scoped memory for tpu_custom_call.1']
    #allocation5 [shape = 'u8[4096]{0}', space=vmem, size = 0x1000, scoped, tag = 'output window, operand 0, single buffered']
    %6 = vsyncpa [#allocation3], 0
    %7 = vsyncpa [#allocation4], 0
    // Predicated region
    $region2: #{tpu_custom_call.1} parent=1 // pred_check
      _
    $region3: #{tpu_custom_call.1} parent=1 // pred_check_branch
      %9 = sbr.rel (0) target = $region5
    $region4: #{tpu_custom_call.1} parent=1 // pred_region
      %s11 = ssub.s32 128, 128
      %12 = vsyncadd [#allocation3], %s11
      %s14 = sshll.u32 [#allocation2], 4
      %s15 = int_to_ptr.vmem [resolvable:$true] %s14
      %17 = dma.hbm_to_vmem [thread:$0]  %s0, 128, %s15, [#allocation3]
    $region5: #{tpu_custom_call.1} parent=1 // pred_fallthru
      _
    // Predicated region
    $region6: #{tpu_custom_call.1} parent=1 // pred_check
      _
    $region7: #{tpu_custom_call.1} parent=1 // pred_check_branch
      %19 = sbr.rel (0) target = $region9
    $region8: #{tpu_custom_call.1} parent=1 // pred_region
      %20 = dma.done [#allocation3], 128
    $region9: #{tpu_custom_call.1} parent=1 // pred_fallthru
      _
    %v21 = vld [vmem:[#allocation2] sm:$0xff]
    %22 = vrot.lane.b32.xlu0 %v21, 1
    %v23 = vpop.permute.xlu0 %22
    %24 = vst [vmem:[#allocation5] sm:$0xff] %v23
    // Predicated region
    $region10: #{tpu_custom_call.1} parent=1 // pred_check
      _
    $region11: #{tpu_custom_call.1} parent=1 // pred_check_branch
      %26 = sbr.rel (0) target = $region13
    $region12: #{tpu_custom_call.1} parent=1 // pred_region
      %s28 = ssub.s32 128, 128
      %29 = vsyncadd [#allocation4], %s28
      %s31 = sshll.u32 [#allocation5], 4
      %s32 = int_to_ptr.vmem [resolvable:$true] %s31
      %34 = dma.vmem_to_hbm [thread:$0]  %s32, 128, %s1, [#allocation4]
    $region13: #{tpu_custom_call.1} parent=1 // pred_fallthru
      _
    // Predicated region
    $region14: #{tpu_custom_call.1} parent=1 // pred_check
      _
    $region15: #{tpu_custom_call.1} parent=1 // pred_check_branch
      %36 = sbr.rel (0) target = $region17
    $region16: #{tpu_custom_call.1} parent=1 // pred_region
      %37 = dma.done [#allocation4], 128
    $region17: #{tpu_custom_call.1} parent=1 // pred_fallthru
      _
    %38 = vsyncpa [#allocation3], 1
    %39 = vsyncpa [#allocation4], 1

</llo_original>
